<compile_context>
chip_gen: v7x
topology: tpu7x:2x2x1
jax: 0.10.0
libtpu: 0.0.40
codegen_flags: <defaults>
</compile_context>

<pallas_src>
import math

import jax
import jax.numpy as jnp
from jax.experimental import pallas as pl
from jax.experimental.pallas import tpu as pltpu

IN_FEATURES = 9 + 2   # 11
HIDDEN = 10
OUT_FEATURES = 8


def _round_up(n, m):
    return ((n + m - 1) // m) * m


def _pick_tile(batch, block_b):
    """Lane-aligned batch tile, padded batch, and grid length.

    Picks the largest tile <= block_b while (a) keeping >= 2 grid steps when the
    batch allows it (so the "parallel" axis can occupy both v7x TensorCores) and
    (b) minimizing padded lanes when batch >> block_b.
    """
    block_b = max(128, _round_up(block_b, 128))
    bp_min = _round_up(max(batch, 1), 128)
    n_steps = -(-bp_min // block_b)            # ceil
    if bp_min >= 256:
        n_steps = max(n_steps, 2)
    tb = _round_up(-(-bp_min // n_steps), 128)
    return tb, n_steps * tb, n_steps


def micro_nn_kernel(x_ref, w1_ref, b1_ref, w2_ref, b2_ref, o_ref):
    # Lane-dense layout: batch on the 128-lane axis, features on sublanes.
    #   x_ref : (11, TB) bf16     w1_ref: (10, 11) f32    b1_ref: (10, 1) f32
    #   w2_ref: (8, 10)  f32      b2_ref: (8, 1)  f32     o_ref : (8, TB) bf16
    x = x_ref[...].astype(jnp.float32)

    # Layer 1 on the MXU (f32 accumulate), bias + ReLU on the VPU.
    h = jnp.dot(w1_ref[...], x, preferred_element_type=jnp.float32) + b1_ref[...]
    h = jnp.maximum(h, 0.0)

    # Layer 2 also on the MXU (the old unrolled broadcast-FMA loop burned
    # VPU/XLU slots while the vector-extended/MXU slot sat idle).
    logits = jnp.dot(w2_ref[...], h, preferred_element_type=jnp.float32) + b2_ref[...]

    # Softmax over the 8 action rows (sublane axis); batch stays on lanes.
    m = jnp.max(logits, axis=0, keepdims=True)
    e = jnp.exp(logits - m)
    denom = jnp.sum(e, axis=0, keepdims=True)
    # Exact divide: the approx EUP reciprocal made row sums drift > 1e-3 and
    # its "free slot" saving is irrelevant for an HBM-bound kernel.
    o_ref[...] = (e / denom).astype(o_ref.dtype)


def micro_nn_forward_fm(x_fm, w1, b1, w2, b2, *, block_b=16384, interpret=False):
    """Features-major forward — the fast path with no transposes anywhere.

    x_fm : (11, B)  observations, batch on the trailing (lane) axis; bf16 preferred.
    w1   : (10, 11) PyTorch nn.Linear layout (out, in).
    b1   : (10,)
    w2   : (8, 10)
    b2   : (8,)
    Returns (8, B) bf16 softmax probabilities (lane-dense slab).
    """
    assert x_fm.shape[0] == IN_FEATURES
    batch = x_fm.shape[1]
    tb, bp, n_steps = _pick_tile(batch, block_b)

    x_fm = x_fm.astype(jnp.bfloat16)
    if bp != batch:
        x_fm = jnp.pad(x_fm, ((0, 0), (0, bp - batch)))

    w1c = jnp.asarray(w1, jnp.float32).reshape(HIDDEN, IN_FEATURES)
    b1c = jnp.asarray(b1, jnp.float32).reshape(HIDDEN, 1)
    w2c = jnp.asarray(w2, jnp.float32).reshape(OUT_FEATURES, HIDDEN)
    b2c = jnp.asarray(b2, jnp.float32).reshape(OUT_FEATURES, 1)

    # VMEM: 2 buffered bf16 input tiles (11 -> 16 padded sublanes) + 2 buffered
    # bf16 output tiles + f32 temps (x, h, logits/e/denom) ~= 350 B per lane.
    # Budget generously but stay well under v7x's 64 MiB physical VMEM.
    vmem_limit = int(min(40 * 1024 * 1024, max(4 * 1024 * 1024, 640 * tb)))

    def resident(shape):
        # Tiny weights / biases: same block every grid step (stay VMEM-resident).
        return pl.BlockSpec(shape, lambda i: (0, 0))

    out_fm = pl.pallas_call(
        micro_nn_kernel,
        out_shape=jax.ShapeDtypeStruct((OUT_FEATURES, bp), jnp.bfloat16),
        grid=(n_steps,),
        in_specs=[
            pl.BlockSpec((IN_FEATURES, tb), lambda i: (0, i)),
            resident((HIDDEN, IN_FEATURES)),
            resident((HIDDEN, 1)),
            resident((OUT_FEATURES, HIDDEN)),
            resident((OUT_FEATURES, 1)),
        ],
        out_specs=pl.BlockSpec((OUT_FEATURES, tb), lambda i: (0, i)),
        compiler_params=pltpu.CompilerParams(
            dimension_semantics=("parallel",),   # shard batch across TCs (v7x)
            vmem_limit_bytes=vmem_limit,
        ),
        interpret=interpret,
    )(x_fm, w1c, b1c, w2c, b2c)

    return out_fm[:, :batch] if bp != batch else out_fm


def micro_nn_forward(x, w1, b1, w2, b2, *, block_b=16384, min_kernel_batch=2048):
    """(B, 11) -> (B, 8) drop-in equivalent of Micro_NN_brain.forward.

    Small batches (the simulation's native B~8) skip the kernel entirely.  For
    large batches prefer `micro_nn_forward_fm` with features-major data — the
    two HBM transpose passes done here roughly triple end-to-end traffic.
    """
    if x.shape[0] < min_kernel_batch:
        return reference_forward(jnp.asarray(x, jnp.float32), w1, b1, w2, b2)
    out_fm = micro_nn_forward_fm(x.T, w1, b1, w2, b2, block_b=block_b)
    return out_fm.T.astype(jnp.float32)


def reference_forward(x, w1, b1, w2, b2):
    # Weights in PyTorch nn.Linear (out, in) layout.
    h = jnp.maximum(x @ w1.T + b1, 0.0)
    return jax.nn.softmax(h @ w2.T + b2, axis=-1)


def kaiming_uniform(key, fan_in, shape):
    # torch.nn.init.kaiming_uniform_(a=0, mode='fan_in', nonlinearity='relu'):
    # bound = sqrt(6 / fan_in)
    bound = math.sqrt(6.0 / fan_in)
    return jax.random.uniform(key, shape, jnp.float32, minval=-bound, maxval=bound)


if __name__ == "__main__":
    key = jax.random.PRNGKey(0)
    k_x, k_w1, k_w2 = jax.random.split(key, 3)

    # Small, but exercises padding (B not a multiple of 128), slicing and the
    # 2-step "parallel" grid.
    B = 520
    x = jax.random.uniform(k_x, (B, IN_FEATURES), jnp.float32, minval=-2.0, maxval=2.0)

    # Deterministic "genome": kaiming-uniform weights in the PyTorch (out, in)
    # layout, zero biases — as in generate_random_genome().
    w1 = kaiming_uniform(k_w1, IN_FEATURES, (HIDDEN, IN_FEATURES))
    b1 = jnp.zeros((HIDDEN,), jnp.float32)
    w2 = kaiming_uniform(k_w2, HIDDEN, (OUT_FEATURES, HIDDEN))
    b2 = jnp.zeros((OUT_FEATURES,), jnp.float32)

    # Features-major kernel path (production layout: build observations with the
    # batch on the trailing axis so this transpose never happens in real use).
    x_fm = x.T.astype(jnp.bfloat16)                      # (11, B), demo-only transpose
    out_fm = micro_nn_forward_fm(x_fm, w1, b1, w2, b2)
    out_fm = jax.block_until_ready(out_fm)
    assert out_fm.shape == (OUT_FEATURES, B) and out_fm.dtype == jnp.bfloat16

    out = out_fm.T.astype(jnp.float32)                   # (B, 8), for checks only
    x_q = x_fm.astype(jnp.float32).T                     # exactly what the kernel saw
    ref_q = reference_forward(x_q, w1, b1, w2, b2)       # same bf16-rounded input
    ref = reference_forward(x, w1, b1, w2, b2)           # full-f32 module semantics

    # bf16 output rounding dominates the tolerance (~2e-3 abs on probabilities).
    assert bool(jnp.all(jnp.abs(jnp.sum(out, axis=-1) - 1.0) < 1e-2))
    assert float(jnp.max(jnp.abs(out - ref_q))) < 1e-2
    assert float(jnp.max(jnp.abs(out - ref))) < 5e-2

    # Small-batch dispatch path (the simulation's native B~8 skips the kernel).
    small = micro_nn_forward(x[:8], w1, b1, w2, b2)
    assert small.shape == (8, OUT_FEATURES)
    assert bool(jnp.allclose(jnp.sum(small, axis=-1), 1.0, atol=1e-5))

    print("KERNEL_OK")
</pallas_src>

<mosaic_0001>
module attributes {stable_mosaic.version = 11 : i64} {
  func.func @micro_nn_kernel(%arg0: i32, %arg1: memref<11x384xbf16, #tpu.memory_space<vmem>>, %arg2: memref<10x11xf32, #tpu.memory_space<vmem>>, %arg3: memref<10x1xf32, #tpu.memory_space<vmem>>, %arg4: memref<8x10xf32, #tpu.memory_space<vmem>>, %arg5: memref<8x1xf32, #tpu.memory_space<vmem>>, %arg6: memref<8x384xbf16, #tpu.memory_space<vmem>>) attributes {dimension_semantics = [#tpu.dimension_semantics<parallel>], iteration_bounds = array<i64: 2>, scalar_prefetch = 0 : i64, scratch_operands = 0 : i64, tpu.core_type = #tpu.core_type<tc>, window_params = [{transform_indices = @transform_0, window_bounds = array<i64: 11, 384>}, {pipeline_mode = #tpu.pipeline_mode<synchronous>, transform_indices = @transform_1, window_bounds = array<i64: 10, 11>}, {pipeline_mode = #tpu.pipeline_mode<synchronous>, transform_indices = @transform_2, window_bounds = array<i64: 10, 1>}, {pipeline_mode = #tpu.pipeline_mode<synchronous>, transform_indices = @transform_3, window_bounds = array<i64: 8, 10>}, {pipeline_mode = #tpu.pipeline_mode<synchronous>, transform_indices = @transform_4, window_bounds = array<i64: 8, 1>}, {transform_indices = @transform_5, window_bounds = array<i64: 8, 384>}]} {
    %c0 = arith.constant 0 : index
    %c0_0 = arith.constant 0 : index
    %0 = vector.load %arg1[%c0, %c0_0] : memref<11x384xbf16, #tpu.memory_space<vmem>>, vector<11x384xbf16>
    %1 = arith.extf %0 : vector<11x384xbf16> to vector<11x384xf32>
    %c0_1 = arith.constant 0 : index
    %c0_2 = arith.constant 0 : index
    %2 = vector.load %arg2[%c0_1, %c0_2] : memref<10x11xf32, #tpu.memory_space<vmem>>, vector<10x11xf32>
    %cst = arith.constant dense<0.000000e+00> : vector<10x384xf32>
    %3 = tpu.matmul %2, %1, %cst {dimension_numbers = #tpu.dot_dimension_numbers<[1], [0], [0], [1], [0, 0, 1, 1], [], []>} : vector<10x11xf32>, vector<11x384xf32>, vector<10x384xf32> -> vector<10x384xf32>
    %c0_3 = arith.constant 0 : index
    %c0_4 = arith.constant 0 : index
    %4 = vector.load %arg3[%c0_3, %c0_4] : memref<10x1xf32, #tpu.memory_space<vmem>>, vector<10x1xf32>
    %5 = vector.broadcast %4 : vector<10x1xf32> to vector<10x384xf32>
    %6 = arith.addf %3, %5 : vector<10x384xf32>
    %cst_5 = arith.constant 0.000000e+00 : f32
    %7 = vector.broadcast %cst_5 : f32 to vector<10x384xf32>
    %8 = arith.maximumf %6, %7 : vector<10x384xf32>
    %c0_6 = arith.constant 0 : index
    %c0_7 = arith.constant 0 : index
    %9 = vector.load %arg4[%c0_6, %c0_7] : memref<8x10xf32, #tpu.memory_space<vmem>>, vector<8x10xf32>
    %cst_8 = arith.constant dense<0.000000e+00> : vector<8x384xf32>
    %10 = tpu.matmul %9, %8, %cst_8 {dimension_numbers = #tpu.dot_dimension_numbers<[1], [0], [0], [1], [0, 0, 1, 1], [], []>} : vector<8x10xf32>, vector<10x384xf32>, vector<8x384xf32> -> vector<8x384xf32>
    %c0_9 = arith.constant 0 : index
    %c0_10 = arith.constant 0 : index
    %11 = vector.load %arg5[%c0_9, %c0_10] : memref<8x1xf32, #tpu.memory_space<vmem>>, vector<8x1xf32>
    %12 = vector.broadcast %11 : vector<8x1xf32> to vector<8x384xf32>
    %13 = arith.addf %10, %12 : vector<8x384xf32>
    %cst_11 = arith.constant dense<0xFF800000> : vector<384xf32>
    %14 = vector.multi_reduction <maximumf>, %13, %cst_11 [0] : vector<8x384xf32> to vector<384xf32>
    %15 = vector.shape_cast %14 : vector<384xf32> to vector<1x384xf32>
    %16 = vector.broadcast %15 : vector<1x384xf32> to vector<8x384xf32>
    %17 = arith.subf %13, %16 : vector<8x384xf32>
    %18 = math.exp %17 : vector<8x384xf32>
    %cst_12 = arith.constant dense<0.000000e+00> : vector<384xf32>
    %19 = vector.multi_reduction <add>, %18, %cst_12 [0] : vector<8x384xf32> to vector<384xf32>
    %20 = vector.shape_cast %19 : vector<384xf32> to vector<1x384xf32>
    %21 = vector.broadcast %20 : vector<1x384xf32> to vector<8x384xf32>
    %22 = arith.divf %18, %21 : vector<8x384xf32>
    %23 = arith.truncf %22 : vector<8x384xf32> to vector<8x384xbf16>
    %c0_13 = arith.constant 0 : index
    %c0_14 = arith.constant 0 : index
    %24 = vector.load %arg6[%c0_13, %c0_14] : memref<8x384xbf16, #tpu.memory_space<vmem>>, vector<8x384xbf16>
    tpu.vector_store %arg6[%c0_13, %c0_14], %23 {strides = array<i32>} : memref<8x384xbf16, #tpu.memory_space<vmem>>, vector<8x384xbf16>,
    return
  }
  func.func @transform_0(%arg0: i32) -> (i32, i32) {
    %c0_i32 = arith.constant 0 : i32
    %c0_i32_0 = arith.constant 0 : i32
    return %c0_i32, %arg0 : i32, i32
  }
  func.func @transform_1(%arg0: i32) -> (i32, i32) {
    %c0_i32 = arith.constant 0 : i32
    %c0_i32_0 = arith.constant 0 : i32
    %c0_i32_1 = arith.constant 0 : i32
    return %c0_i32, %c0_i32_0 : i32, i32
  }
  func.func @transform_2(%arg0: i32) -> (i32, i32) {
    %c0_i32 = arith.constant 0 : i32
    %c0_i32_0 = arith.constant 0 : i32
    %c0_i32_1 = arith.constant 0 : i32
    return %c0_i32, %c0_i32_0 : i32, i32
  }
  func.func @transform_3(%arg0: i32) -> (i32, i32) {
    %c0_i32 = arith.constant 0 : i32
    %c0_i32_0 = arith.constant 0 : i32
    %c0_i32_1 = arith.constant 0 : i32
    return %c0_i32, %c0_i32_0 : i32, i32
  }
  func.func @transform_4(%arg0: i32) -> (i32, i32) {
    %c0_i32 = arith.constant 0 : i32
    %c0_i32_0 = arith.constant 0 : i32
    %c0_i32_1 = arith.constant 0 : i32
    return %c0_i32, %c0_i32_0 : i32, i32
  }
  func.func @transform_5(%arg0: i32) -> (i32, i32) {
    %c0_i32 = arith.constant 0 : i32
    %c0_i32_0 = arith.constant 0 : i32
    return %c0_i32, %arg0 : i32, i32
  }
}

</mosaic_0001>

<llo_original>
// kernel: tpu_custom_call.1
$region0: #{tpu_custom_call.1}
  #allocation0 [shape = 'u32[]', space=smem, size = 0x4, offset = 0x4, fixed_abs, tag = 'smem constant byte address 0x4 - core index']
  #allocation1 [shape = 'u32[144,128]{1,0:T(1,128)}', space=vmem, size = 0x12000, scoped, tag = 'internal scratch']
  %s0 = inlined_call_operand.hbm [shape: bf16[11,768], index: 0, kind: input, shape index: {}]
  %s1 = inlined_call_operand.vmem [shape: f32[10,11], index: 1, kind: input, shape index: {}]
  %s2 = inlined_call_operand.vmem [shape: f32[10,1], index: 2, kind: input, shape index: {}]
  %s3 = inlined_call_operand.vmem [shape: f32[8,10], index: 3, kind: input, shape index: {}]
  %s4 = inlined_call_operand.vmem [shape: f32[8,1], index: 4, kind: input, shape index: {}]
  %s5 = inlined_call_operand.hbm [shape: bf16[8,768], index: 5, kind: output, shape index: {}]
  %s6 = sld [smem:[#allocation0]]
  $region57: #{tpu_custom_call.1} parent=0
    _
  %s8 = ssub.s32 1, %s6
  %s9 = scalar_select 0, %s8, %s6
  $region1: #{tpu_custom_call.1} parent=0
    #allocation2 [shape = 'u8[24576]{0}', space=vmem, size = 0x6000, scoped, tag = 'input window, operand 0']
    #allocation3 [shape = 's32[2]{0}', space=sflag, size = 0x8, scoped, tag = 'scoped memory for tpu_custom_call.1']
    #allocation4 [shape = 's32[2]{0}', space=sflag, size = 0x8, scoped, tag = 'scoped memory for tpu_custom_call.1']
    #allocation5 [shape = 'u8[12288]{0}', space=vmem, size = 0x3000, scoped, tag = 'output window, operand 0']
    %10 = vsyncpa [#allocation3], 0
    %s11 = scalar_lea.sflag [#allocation3], 1
    %12 = vsyncpa %s11, 0
    %13 = vsyncpa [#allocation4], 0
    %s14 = scalar_lea.sflag [#allocation4], 1
    %15 = vsyncpa %s14, 0
    loop: start=0, step=1, limit=4
    $region2: #{tpu_custom_call.1} parent=1 // loop_pre_header
      _
    $region3: #{tpu_custom_call.1} parent=1 // loop_header
      %s17 = sphi 0, %s21
      %p18 = scmp.ge.s32.totalorder %s17, 4
      %s27 = sphi 0, %s29
      %s30 = sphi 0, %s27
      %s31 = sphi 0, %s30
      %s47 = sphi 0, %s31
      %s51 = sphi 0, %s51
      %s53 = sphi 0, %s51
      %s54 = sphi 0, %s53
      %s68 = sphi 0, %s54
      %s72 = sphi 0, %s72
      %s74 = sphi 0, %s72
      %s75 = sphi 0, %s74
      %s89 = sphi 0, %s75
      %s93 = sphi 0, %s93
      %s95 = sphi 0, %s93
      %s96 = sphi 0, %s95
      %s110 = sphi 0, %s96
      %s114 = sphi 0, %s114
      %s116 = sphi 0, %s114
      %s117 = sphi 0, %s116
      %s131 = sphi 0, %s117
      %s137 = sphi 0, %s139
      %s140 = sphi 0, %s137
      %s141 = sphi 0, %s140
      %s157 = sphi 0, %s141
    $region4: #{tpu_custom_call.1} parent=1 // loop_header_branch
      %20 = sbr.rel (%p18) target = $region8
    $region5: #{tpu_custom_call.1} parent=1 // loop_body
      %s22 = ssub.s32 %s17, 1
      %s23 = ssub.s32 %s17, 2
      %s24 = sadd.s32 %s17, 1
      %s25 = ssub.s32 %s17, %s24
      %p26 = scmp.eq.s32.totalorder %s25, 0
      %s28 = sadd.s32 %s27, 1
      %s29 = scalar_select %p26, %s27, %s28
      %p32 = pneg %p26
      %p33 = scmp.eq.s32.totalorder %s17, 1
      %p34 = por %p32, %p33
      %p35 = scmp.ne.s32.totalorder %s27, %s30
      %p36 = scmp.eq.s32.totalorder %s17, 0
      %p37 = por %p35, %p36
      %p38 = scmp.ne.s32.totalorder %s27, %s30
      %p39 = scmp.eq.s32.totalorder %s22, 1
      %p40 = por %p38, %p39
      %p41 = scmp.ne.s32.totalorder %s30, %s31
      %p42 = scmp.eq.s32.totalorder %s22, 0
      %p43 = por %p41, %p42
      %p44 = scmp.ne.s32.totalorder %s30, %s31
      %p45 = scmp.eq.s32.totalorder %s23, 1
      %p46 = por %p44, %p45
      %p48 = scmp.ne.s32.totalorder %s31, %s47
      %p49 = scmp.eq.s32.totalorder %s23, 0
      %p50 = por %p48, %p49
      %s52 = sadd.s32 %s51, 1
      %p55 = scmp.eq.s32.totalorder %s17, 1
      %p56 = scmp.ne.s32.totalorder %s51, %s53
      %p57 = scmp.eq.s32.totalorder %s17, 0
      %p58 = por %p56, %p57
      %p59 = scmp.ne.s32.totalorder %s51, %s53
      %p60 = scmp.eq.s32.totalorder %s22, 1
      %p61 = por %p59, %p60
      %p62 = scmp.ne.s32.totalorder %s53, %s54
      %p63 = scmp.eq.s32.totalorder %s22, 0
      %p64 = por %p62, %p63
      %p65 = scmp.ne.s32.totalorder %s53, %s54
      %p66 = scmp.eq.s32.totalorder %s23, 1
      %p67 = por %p65, %p66
      %p69 = scmp.ne.s32.totalorder %s54, %s68
      %p70 = scmp.eq.s32.totalorder %s23, 0
      %p71 = por %p69, %p70
      %s73 = sadd.s32 %s72, 1
      %p76 = scmp.eq.s32.totalorder %s17, 1
      %p77 = scmp.ne.s32.totalorder %s72, %s74
      %p78 = scmp.eq.s32.totalorder %s17, 0
      %p79 = por %p77, %p78
      %p80 = scmp.ne.s32.totalorder %s72, %s74
      %p81 = scmp.eq.s32.totalorder %s22, 1
      %p82 = por %p80, %p81
      %p83 = scmp.ne.s32.totalorder %s74, %s75
      %p84 = scmp.eq.s32.totalorder %s22, 0
      %p85 = por %p83, %p84
      %p86 = scmp.ne.s32.totalorder %s74, %s75
      %p87 = scmp.eq.s32.totalorder %s23, 1
      %p88 = por %p86, %p87
      %p90 = scmp.ne.s32.totalorder %s75, %s89
      %p91 = scmp.eq.s32.totalorder %s23, 0
      %p92 = por %p90, %p91
      %s94 = sadd.s32 %s93, 1
      %p97 = scmp.eq.s32.totalorder %s17, 1
      %p98 = scmp.ne.s32.totalorder %s93, %s95
      %p99 = scmp.eq.s32.totalorder %s17, 0
      %p100 = por %p98, %p99
      %p101 = scmp.ne.s32.totalorder %s93, %s95
      %p102 = scmp.eq.s32.totalorder %s22, 1
      %p103 = por %p101, %p102
      %p104 = scmp.ne.s32.totalorder %s95, %s96
      %p105 = scmp.eq.s32.totalorder %s22, 0
      %p106 = por %p104, %p105
      %p107 = scmp.ne.s32.totalorder %s95, %s96
      %p108 = scmp.eq.s32.totalorder %s23, 1
      %p109 = por %p107, %p108
      %p111 = scmp.ne.s32.totalorder %s96, %s110
      %p112 = scmp.eq.s32.totalorder %s23, 0
      %p113 = por %p111, %p112
      %s115 = sadd.s32 %s114, 1
      %p118 = scmp.eq.s32.totalorder %s17, 1
      %p119 = scmp.ne.s32.totalorder %s114, %s116
      %p120 = scmp.eq.s32.totalorder %s17, 0
      %p121 = por %p119, %p120
      %p122 = scmp.ne.s32.totalorder %s114, %s116
      %p123 = scmp.eq.s32.totalorder %s22, 1
      %p124 = por %p122, %p123
      %p125 = scmp.ne.s32.totalorder %s116, %s117
      %p126 = scmp.eq.s32.totalorder %s22, 0
      %p127 = por %p125, %p126
      %p128 = scmp.ne.s32.totalorder %s116, %s117
      %p129 = scmp.eq.s32.totalorder %s23, 1
      %p130 = por %p128, %p129
      %p132 = scmp.ne.s32.totalorder %s117, %s131
      %p133 = scmp.eq.s32.totalorder %s23, 0
      %p134 = por %p132, %p133
      %s135 = ssub.s32 %s17, %s24
      %p136 = scmp.eq.s32.totalorder %s135, 0
      %s138 = sadd.s32 %s137, 1
      %s139 = scalar_select %p136, %s137, %s138
      %p142 = pneg %p136
      %p143 = scmp.eq.s32.totalorder %s17, 1
      %p144 = por %p142, %p143
      %p145 = scmp.ne.s32.totalorder %s137, %s140
      %p146 = scmp.eq.s32.totalorder %s17, 0
      %p147 = por %p145, %p146
      %p148 = scmp.ne.s32.totalorder %s137, %s140
      %p149 = scmp.eq.s32.totalorder %s22, 1
      %p150 = por %p148, %p149
      %p151 = scmp.ne.s32.totalorder %s140, %s141
      %p152 = scmp.eq.s32.totalorder %s22, 0
      %p153 = por %p151, %p152
      %p154 = scmp.ne.s32.totalorder %s140, %s141
      %p155 = scmp.eq.s32.totalorder %s23, 1
      %p156 = por %p154, %p155
      %p158 = scmp.ne.s32.totalorder %s141, %s157
      %p159 = scmp.eq.s32.totalorder %s23, 0
      %p160 = por %p158, %p159
      %p161 = scmp.le.s32.totalorder 1, %s17
      %p162 = scmp.lt.s32.totalorder %s17, 3
      %p163 = pnand %p161, %p162
      %p164 = pneg %p163
      // Predicated region
      $region9: #{tpu_custom_call.1} parent=5 // pred_check
        _
      $region10: #{tpu_custom_call.1} parent=5 // pred_check_branch
        %166 = sbr.rel (%p163) target = $region12
      $region11: #{tpu_custom_call.1} parent=5 // pred_region
        %s167 = ssub.s32 %s17, 1
        // Predicated region
        $region13: #{tpu_custom_call.1} parent=11 // pred_check
          %p168 = pneg %p64
        $region14: #{tpu_custom_call.1} parent=11 // pred_check_branch
          %170 = sbr.rel (%p168) target = $region16
        $region15: #{tpu_custom_call.1} parent=11 // pred_region
          _
        $region16: #{tpu_custom_call.1} parent=11 // pred_fallthru
          _
        // Predicated region
        $region17: #{tpu_custom_call.1} parent=11 // pred_check
          %p171 = pneg %p85
        $region18: #{tpu_custom_call.1} parent=11 // pred_check_branch
          %173 = sbr.rel (%p171) target = $region20
        $region19: #{tpu_custom_call.1} parent=11 // pred_region
          _
        $region20: #{tpu_custom_call.1} parent=11 // pred_fallthru
          _
        // Predicated region
        $region21: #{tpu_custom_call.1} parent=11 // pred_check
          %p174 = pneg %p106
        $region22: #{tpu_custom_call.1} parent=11 // pred_check_branch
          %176 = sbr.rel (%p174) target = $region24
        $region23: #{tpu_custom_call.1} parent=11 // pred_region
          _
        $region24: #{tpu_custom_call.1} parent=11 // pred_fallthru
          _
        // Predicated region
        $region25: #{tpu_custom_call.1} parent=11 // pred_check
          %p177 = pneg %p127
        $region26: #{tpu_custom_call.1} parent=11 // pred_check_branch
          %179 = sbr.rel (%p177) target = $region28
        $region27: #{tpu_custom_call.1} parent=11 // pred_region
          _
        $region28: #{tpu_custom_call.1} parent=11 // pred_fallthru
          _
      $region12: #{tpu_custom_call.1} parent=5 // pred_fallthru
        _
      %p180 = scmp.lt.s32.totalorder %s17, 2
      // Predicated region
      $region29: #{tpu_custom_call.1} parent=5 // pred_check
        %p181 = pneg %p180
      $region30: #{tpu_custom_call.1} parent=5 // pred_check_branch
        %183 = sbr.rel (%p181) target = $region32
      $region31: #{tpu_custom_call.1} parent=5 // pred_region
        // Predicated region
        $region33: #{tpu_custom_call.1} parent=31 // pred_check
          %p184 = pneg %p37
        $region34: #{tpu_custom_call.1} parent=31 // pred_check_branch
          %186 = sbr.rel (%p184) target = $region36
        $region35: #{tpu_custom_call.1} parent=31 // pred_region
          %s187 = sand.u32 %s27, 1
          %s188 = scalar_lea.sflag [#allocation3], %s187
          %s189 = sand.u32 %s27, 1
          %s190 = smul.addr %s189, 24
          %s191 = scalar_lea.vmem [#allocation2], %s190
          %s192 = smul.u32 3, %s17
          %s194 = ssub.s32 384, 384
          %195 = vsyncadd %s188, %s194
          %s196 = smul.addr %s192, 64
          %s197 = scalar_lea.hbm %s0, %s196
          %s198 = sshll.u32 %s191, 4
          %s199 = int_to_ptr.vmem [resolvable:$true] %s198
          %204 = dma.hbm_to_vmem [thread:$0]  %s197, 384, %s199, %s188, 384, 192, 12
        $region36: #{tpu_custom_call.1} parent=31 // pred_fallthru
          _
      $region32: #{tpu_custom_call.1} parent=5 // pred_fallthru
        _
      %p205 = scmp.le.s32.totalorder 1, %s17
      %p206 = scmp.lt.s32.totalorder %s17, 3
      %p207 = pnand %p205, %p206
      %p208 = pneg %p207
      // Predicated region
      $region37: #{tpu_custom_call.1} parent=5 // pred_check
        _
      $region38: #{tpu_custom_call.1} parent=5 // pred_check_branch
        %210 = sbr.rel (%p207) target = $region40
      $region39: #{tpu_custom_call.1} parent=5 // pred_region
        %s211 = ssub.s32 %s17, 1
        %s212 = sand.u32 %s30, 1
        %s213 = scalar_lea.sflag [#allocation3], %s212
        %s214 = sand.u32 %s30, 1
        %s215 = smul.addr %s214, 24
        %s216 = scalar_lea.vmem [#allocation2], %s215
        // Predicated region
        $region41: #{tpu_custom_call.1} parent=39 // pred_check
          %p217 = pneg %p43
        $region42: #{tpu_custom_call.1} parent=39 // pred_check_branch
          %219 = sbr.rel (%p217) target = $region44
        $region43: #{tpu_custom_call.1} parent=39 // pred_region
          %220 = dma.done %s213, 384
        $region44: #{tpu_custom_call.1} parent=39 // pred_fallthru
          _
        %s221 = sand.u32 %s30, 1
        %s222 = scalar_lea.sflag [#allocation3], %s221
        %s223 = sand.u32 %s30, 1
        %s224 = smul.addr %s223, 24
        %s225 = scalar_lea.vmem [#allocation2], %s224
        %p226 = pneg %p43
        %p227 = pneg %p40
        %p228 = pneg %p64
        %p229 = pneg %p61
        %p230 = pneg %p85
        %p231 = pneg %p82
        %p232 = pneg %p106
        %p233 = pneg %p103
        %p234 = pneg %p127
        %p235 = pneg %p124
        %p236 = pneg %p153
        %p237 = pneg %p150
        %s238 = sand.u32 %s140, 1
        %s239 = scalar_lea.sflag [#allocation4], %s238
        %s240 = sand.u32 %s140, 1
        %s241 = smul.addr %s240, 12
        %s242 = scalar_lea.vmem [#allocation5], %s241
        %s243 = smul.u32 3, %s22
        %s244 = smul.u32 3, %s22
        %v245 = vld [vmem:[%s216] sm:$0xff]
        %v246 = vld [vmem:[%s216 + $0x8] sm:$0xf]
        %v247 = vld [vmem:[%s216 + $0xc] sm:$0x33]
        %v248 = vld [vmem:[%s216 + $0x14] sm:$0x3]
        %v249 = vunpack.c.l.bf16 %v245
        %v250 = vunpack.c.h.bf16 %v245
        %v251 = vunpack.c.l.bf16 %v246
        %v252 = vunpack.c.l.bf16 %v247
        %v253 = vunpack.c.h.bf16 %v247
        %v254 = vunpack.c.l.bf16 %v248
        %v255 = vld [vmem:[%s1] sm:$0xff]
        %v256 = vld [vmem:[%s1 + $0x8] sm:$0x3]
        %v257 = vld [vmem:[%s2] sm:$0xff]
        %v258 = vld [vmem:[%s2 + $0x8] sm:$0x3]
        %260 = vset.pattern.permute.xlu0 0
        %261 = vperm.xlu0 %260, %v257
        %v262 = vpop.permute.xlu0 %261
        %265 = vset.pattern.permute.xlu0 0
        %266 = vperm.xlu0 %265, %v258
        %v267 = vpop.permute.xlu0 %266
        %vm269 = vcmask 89088
        %v271 = vsel %vm269, %v255, 0
        %v274 = vsel %vm269, %v256, 0
        %vm276 = vcmask 1042432
        %v278 = vsel %vm276, %v252, 0
        %v281 = vsel %vm276, %v253, 0
        %v284 = vsel %vm276, %v254, 0
        %286 = vmatprep.subr.mxu0 %v250
        %287 = vmatpush1.msra.mxu0 %v249
        %288 = vmatprep.subr.mxu0 %v281
        %289 = vmatpush1.msra.mxu0 %v278
        %290 = vmatprep.subr.mxu0 0.0
        %291 = vmatpush1.msra.mxu0 0.0
        %292 = vmatprep.subr.mxu0 0.0
        %293 = vmatpush1.msra.mxu0 0.0
        %294 = vmatprep.subr.mxu0 0.0
        %295 = vmatpush1.msra.mxu0 0.0
        %296 = vmatprep.subr.mxu0 0.0
        %297 = vmatpush1.msra.mxu0 0.0
        %298 = vmatprep.subr.mxu0 0.0
        %299 = vmatpush1.msra.mxu0 0.0
        %300 = vmatprep.subr.mxu0 0.0
        %301 = vmatpush1.msra.mxu0 0.0
        %302 = vmatprep.subr.mxu0 0.0
        %303 = vmatpush1.msra.mxu0 0.0
        %304 = vmatprep.subr.mxu0 0.0
        %305 = vmatpush1.msra.mxu0 0.0
        %306 = vmatprep.subr.mxu0 0.0
        %307 = vmatpush1.msra.mxu0 0.0
        %308 = vmatprep.subr.mxu0 0.0
        %309 = vmatpush1.msra.mxu0 0.0
        %310 = vmatprep.subr.mxu0 0.0
        %311 = vmatpush1.msra.mxu0 0.0
        %312 = vmatprep.subr.mxu0 0.0
        %313 = vmatpush1.msra.mxu0 0.0
        %314 = vmatprep.subr.mxu0 0.0
        %315 = vmatpush1.msra.mxu0 0.0
        %316 = vmatprep.subr.mxu0 0.0
        %317 = vmatpush1.msra.mxu0 0.0
        %318 = vmatprep.subr.mxu0 0.0
        %319 = vmatpush1.msra.mxu0 0.0
        %320 = vmatprep.subr.mxu0 0.0
        %321 = vmatpush1.msra.mxu0 0.0
        %322 = vmatprep.subr.mxu0 0.0
        %323 = vmatpush1.msra.mxu0 0.0
        %324 = vmatprep.subr.mxu0 0.0
        %325 = vmatpush1.msra.mxu0 0.0
        %326 = vmatprep.subr.mxu0 0.0
        %327 = vmatpush1.msra.mxu0 0.0
        %328 = vmatprep.subr.mxu0 0.0
        %329 = vmatpush1.msra.mxu0 0.0
        %330 = vmatprep.subr.mxu0 0.0
        %331 = vmatpush1.msra.mxu0 0.0
        %332 = vmatprep.subr.mxu0 0.0
        %333 = vmatpush1.msra.mxu0 0.0
        %334 = vmatprep.subr.mxu0 0.0
        %335 = vmatpush1.msra.mxu0 0.0
        %336 = vmatprep.subr.mxu0 0.0
        %337 = vmatpush1.msra.mxu0 0.0
        %338 = vmatprep.subr.mxu0 0.0
        %339 = vmatpush1.msra.mxu0 0.0
        %340 = vmatprep.subr.mxu0 0.0
        %341 = vmatpush1.msra.mxu0 0.0
        %342 = vmatprep.subr.mxu0 0.0
        %343 = vmatpush1.msra.mxu0 0.0
        %344 = vmatprep.subr.mxu0 0.0
        %345 = vmatpush1.msra.mxu0 0.0
        %346 = vmatprep.subr.mxu0 0.0
        %347 = vmatpush1.msra.mxu0 0.0
        %348 = vmatprep.subr.mxu0 0.0
        %349 = vmatpush1.msra.mxu0 0.0
        %350 = vmatprep.mubr.f32.mxu0 0.0
        %351 = vmatmul.mubr.f32.gmra.mrb[0].mxu0 %v271
        %v352 = vpop.f32.mrb[0].mxu0
        %v353 = vadd.f32 %v262, %v352
        %v354 = vpop.f32.mrb[0].mxu0
        %v355 = vadd.f32 %v262, %v354
        %356 = vmatprep.mubr.f32.mxu0 0.0
        %357 = vmatmul.mubr.f32.gmra.mrb[0].mxu0 %v274
        %v358 = vpop.f32.mrb[0].mxu0
        %v359 = vadd.f32 %v267, %v358
        %v360 = vpop.f32.mrb[0].mxu0
        %v361 = vadd.f32 %v267, %v360
        %362 = vdwg.mxu0
        %363 = vmatprep.subr.mxu0 0.0
        %364 = vmatpush1.msra.mxu0 %v251
        %365 = vmatprep.subr.mxu0 0.0
        %366 = vmatpush1.msra.mxu0 %v284
        %367 = vmatprep.subr.mxu0 0.0
        %368 = vmatpush1.msra.mxu0 0.0
        %369 = vmatprep.subr.mxu0 0.0
        %370 = vmatpush1.msra.mxu0 0.0
        %371 = vmatprep.subr.mxu0 0.0
        %372 = vmatpush1.msra.mxu0 0.0
        %373 = vmatprep.subr.mxu0 0.0
        %374 = vmatpush1.msra.mxu0 0.0
        %375 = vmatprep.subr.mxu0 0.0
        %376 = vmatpush1.msra.mxu0 0.0
        %377 = vmatprep.subr.mxu0 0.0
        %378 = vmatpush1.msra.mxu0 0.0
        %379 = vmatprep.subr.mxu0 0.0
        %380 = vmatpush1.msra.mxu0 0.0
        %381 = vmatprep.subr.mxu0 0.0
        %382 = vmatpush1.msra.mxu0 0.0
        %383 = vmatprep.subr.mxu0 0.0
        %384 = vmatpush1.msra.mxu0 0.0
        %385 = vmatprep.subr.mxu0 0.0
        %386 = vmatpush1.msra.mxu0 0.0
        %387 = vmatprep.subr.mxu0 0.0
        %388 = vmatpush1.msra.mxu0 0.0
        %389 = vmatprep.subr.mxu0 0.0
        %390 = vmatpush1.msra.mxu0 0.0
        %391 = vmatprep.subr.mxu0 0.0
        %392 = vmatpush1.msra.mxu0 0.0
        %393 = vmatprep.subr.mxu0 0.0
        %394 = vmatpush1.msra.mxu0 0.0
        %395 = vmatprep.subr.mxu0 0.0
        %396 = vmatpush1.msra.mxu0 0.0
        %397 = vmatprep.subr.mxu0 0.0
        %398 = vmatpush1.msra.mxu0 0.0
        %399 = vmatprep.subr.mxu0 0.0
        %400 = vmatpush1.msra.mxu0 0.0
        %401 = vmatprep.subr.mxu0 0.0
        %402 = vmatpush1.msra.mxu0 0.0
        %403 = vmatprep.subr.mxu0 0.0
        %404 = vmatpush1.msra.mxu0 0.0
        %405 = vmatprep.subr.mxu0 0.0
        %406 = vmatpush1.msra.mxu0 0.0
        %407 = vmatprep.subr.mxu0 0.0
        %408 = vmatpush1.msra.mxu0 0.0
        %409 = vmatprep.subr.mxu0 0.0
        %410 = vmatpush1.msra.mxu0 0.0
        %411 = vmatprep.subr.mxu0 0.0
        %412 = vmatpush1.msra.mxu0 0.0
        %413 = vmatprep.subr.mxu0 0.0
        %414 = vmatpush1.msra.mxu0 0.0
        %415 = vmatprep.subr.mxu0 0.0
        %416 = vmatpush1.msra.mxu0 0.0
        %417 = vmatprep.subr.mxu0 0.0
        %418 = vmatpush1.msra.mxu0 0.0
        %419 = vmatprep.subr.mxu0 0.0
        %420 = vmatpush1.msra.mxu0 0.0
        %421 = vmatprep.subr.mxu0 0.0
        %422 = vmatpush1.msra.mxu0 0.0
        %423 = vmatprep.subr.mxu0 0.0
        %424 = vmatpush1.msra.mxu0 0.0
        %425 = vmatprep.subr.mxu0 0.0
        %426 = vmatpush1.msra.mxu0 0.0
        %427 = vmatprep.mubr.f32.mxu0 0.0
        %428 = vmatmul.mubr.f32.gmra.mrb[0].mxu0 %v271
        %v429 = vpop.f32.mrb[0].mxu0
        %v430 = vadd.f32 %v262, %v429
        %v431 = vpop.f32.mrb[0].mxu0
        %432 = vmatprep.mubr.f32.mxu0 0.0
        %433 = vmatmul.mubr.f32.gmra.mrb[0].mxu0 %v274
        %v434 = vpop.f32.mrb[0].mxu0
        %v435 = vadd.f32 %v267, %v434
        %v436 = vpop.f32.mrb[0].mxu0
        %437 = vdwg.mxu0
        %v438 = vmax.f32 %v353, 0.0
        %v439 = vmax.f32 %v355, 0.0
        %v440 = vmax.f32 %v430, 0.0
        %v441 = vmax.f32 %v359, 0.0
        %v442 = vmax.f32 %v361, 0.0
        %v443 = vmax.f32 %v435, 0.0
        %v444 = vld [vmem:[%s3] sm:$0xff]
        %v445 = vld [vmem:[%s4] sm:$0xff]
        %447 = vset.pattern.permute.xlu0 0
        %448 = vperm.xlu0 %447, %v445
        %v449 = vpop.permute.xlu0 %448
        %vm451 = vcmask 80896
        %v453 = vsel %vm451, %v444, 0
        %vm455 = vcmask 1041408
        %v457 = vsel %vm455, %v441, 0
        %v460 = vsel %vm455, %v442, 0
        %v463 = vsel %vm455, %v443, 0
        %465 = vmatprep.subr.mxu0 %v439
        %466 = vmatpush1.msra.mxu0 %v438
        %467 = vmatprep.subr.mxu0 %v460
        %468 = vmatpush1.msra.mxu0 %v457
        %469 = vmatprep.subr.mxu0 0.0
        %470 = vmatpush1.msra.mxu0 0.0
        %471 = vmatprep.subr.mxu0 0.0
        %472 = vmatpush1.msra.mxu0 0.0
        %473 = vmatprep.subr.mxu0 0.0
        %474 = vmatpush1.msra.mxu0 0.0
        %475 = vmatprep.subr.mxu0 0.0
        %476 = vmatpush1.msra.mxu0 0.0
        %477 = vmatprep.subr.mxu0 0.0
        %478 = vmatpush1.msra.mxu0 0.0
        %479 = vmatprep.subr.mxu0 0.0
        %480 = vmatpush1.msra.mxu0 0.0
        %481 = vmatprep.subr.mxu0 0.0
        %482 = vmatpush1.msra.mxu0 0.0
        %483 = vmatprep.subr.mxu0 0.0
        %484 = vmatpush1.msra.mxu0 0.0
        %485 = vmatprep.subr.mxu0 0.0
        %486 = vmatpush1.msra.mxu0 0.0
        %487 = vmatprep.subr.mxu0 0.0
        %488 = vmatpush1.msra.mxu0 0.0
        %489 = vmatprep.subr.mxu0 0.0
        %490 = vmatpush1.msra.mxu0 0.0
        %491 = vmatprep.subr.mxu0 0.0
        %492 = vmatpush1.msra.mxu0 0.0
        %493 = vmatprep.subr.mxu0 0.0
        %494 = vmatpush1.msra.mxu0 0.0
        %495 = vmatprep.subr.mxu0 0.0
        %496 = vmatpush1.msra.mxu0 0.0
        %497 = vmatprep.subr.mxu0 0.0
        %498 = vmatpush1.msra.mxu0 0.0
        %499 = vmatprep.subr.mxu0 0.0
        %500 = vmatpush1.msra.mxu0 0.0
        %501 = vmatprep.subr.mxu0 0.0
        %502 = vmatpush1.msra.mxu0 0.0
        %503 = vmatprep.subr.mxu0 0.0
        %504 = vmatpush1.msra.mxu0 0.0
        %505 = vmatprep.subr.mxu0 0.0
        %506 = vmatpush1.msra.mxu0 0.0
        %507 = vmatprep.subr.mxu0 0.0
        %508 = vmatpush1.msra.mxu0 0.0
        %509 = vmatprep.subr.mxu0 0.0
        %510 = vmatpush1.msra.mxu0 0.0
        %511 = vmatprep.subr.mxu0 0.0
        %512 = vmatpush1.msra.mxu0 0.0
        %513 = vmatprep.subr.mxu0 0.0
        %514 = vmatpush1.msra.mxu0 0.0
        %515 = vmatprep.subr.mxu0 0.0
        %516 = vmatpush1.msra.mxu0 0.0
        %517 = vmatprep.subr.mxu0 0.0
        %518 = vmatpush1.msra.mxu0 0.0
        %519 = vmatprep.subr.mxu0 0.0
        %520 = vmatpush1.msra.mxu0 0.0
        %521 = vmatprep.subr.mxu0 0.0
        %522 = vmatpush1.msra.mxu0 0.0
        %523 = vmatprep.subr.mxu0 0.0
        %524 = vmatpush1.msra.mxu0 0.0
        %525 = vmatprep.subr.mxu0 0.0
        %526 = vmatpush1.msra.mxu0 0.0
        %527 = vmatprep.subr.mxu0 0.0
        %528 = vmatpush1.msra.mxu0 0.0
        %529 = vmatprep.mubr.f32.mxu0 0.0
        %530 = vmatmul.mubr.f32.gmra.mrb[0].mxu0 %v453
        %v531 = vpop.f32.mrb[0].mxu0
        %v532 = vadd.f32 %v449, %v531
        %v533 = vpop.f32.mrb[0].mxu0
        %v534 = vadd.f32 %v449, %v533
        %535 = vdwg.mxu0
        %536 = vmatprep.subr.mxu0 0.0
        %537 = vmatpush1.msra.mxu0 %v440
        %538 = vmatprep.subr.mxu0 0.0
        %539 = vmatpush1.msra.mxu0 %v463
        %540 = vmatprep.subr.mxu0 0.0
        %541 = vmatpush1.msra.mxu0 0.0
        %542 = vmatprep.subr.mxu0 0.0
        %543 = vmatpush1.msra.mxu0 0.0
        %544 = vmatprep.subr.mxu0 0.0
        %545 = vmatpush1.msra.mxu0 0.0
        %546 = vmatprep.subr.mxu0 0.0
        %547 = vmatpush1.msra.mxu0 0.0
        %548 = vmatprep.subr.mxu0 0.0
        %549 = vmatpush1.msra.mxu0 0.0
        %550 = vmatprep.subr.mxu0 0.0
        %551 = vmatpush1.msra.mxu0 0.0
        %552 = vmatprep.subr.mxu0 0.0
        %553 = vmatpush1.msra.mxu0 0.0
        %554 = vmatprep.subr.mxu0 0.0
        %555 = vmatpush1.msra.mxu0 0.0
        %556 = vmatprep.subr.mxu0 0.0
        %557 = vmatpush1.msra.mxu0 0.0
        %558 = vmatprep.subr.mxu0 0.0
        %559 = vmatpush1.msra.mxu0 0.0
        %560 = vmatprep.subr.mxu0 0.0
        %561 = vmatpush1.msra.mxu0 0.0
        %562 = vmatprep.subr.mxu0 0.0
        %563 = vmatpush1.msra.mxu0 0.0
        %564 = vmatprep.subr.mxu0 0.0
        %565 = vmatpush1.msra.mxu0 0.0
        %566 = vmatprep.subr.mxu0 0.0
        %567 = vmatpush1.msra.mxu0 0.0
        %568 = vmatprep.subr.mxu0 0.0
        %569 = vmatpush1.msra.mxu0 0.0
        %570 = vmatprep.subr.mxu0 0.0
        %571 = vmatpush1.msra.mxu0 0.0
        %572 = vmatprep.subr.mxu0 0.0
        %573 = vmatpush1.msra.mxu0 0.0
        %574 = vmatprep.subr.mxu0 0.0
        %575 = vmatpush1.msra.mxu0 0.0
        %576 = vmatprep.subr.mxu0 0.0
        %577 = vmatpush1.msra.mxu0 0.0
        %578 = vmatprep.subr.mxu0 0.0
        %579 = vmatpush1.msra.mxu0 0.0
        %580 = vmatprep.subr.mxu0 0.0
        %581 = vmatpush1.msra.mxu0 0.0
        %582 = vmatprep.subr.mxu0 0.0
        %583 = vmatpush1.msra.mxu0 0.0
        %584 = vmatprep.subr.mxu0 0.0
        %585 = vmatpush1.msra.mxu0 0.0
        %586 = vmatprep.subr.mxu0 0.0
        %587 = vmatpush1.msra.mxu0 0.0
        %588 = vmatprep.subr.mxu0 0.0
        %589 = vmatpush1.msra.mxu0 0.0
        %590 = vmatprep.subr.mxu0 0.0
        %591 = vmatpush1.msra.mxu0 0.0
        %592 = vmatprep.subr.mxu0 0.0
        %593 = vmatpush1.msra.mxu0 0.0
        %594 = vmatprep.subr.mxu0 0.0
        %595 = vmatpush1.msra.mxu0 0.0
        %596 = vmatprep.subr.mxu0 0.0
        %597 = vmatpush1.msra.mxu0 0.0
        %598 = vmatprep.subr.mxu0 0.0
        %599 = vmatpush1.msra.mxu0 0.0
        %600 = vmatprep.mubr.f32.mxu0 0.0
        %601 = vmatmul.mubr.f32.gmra.mrb[0].mxu0 %v453
        %v602 = vpop.f32.mrb[0].mxu0
        %v603 = vadd.f32 %v449, %v602
        %v604 = vpop.f32.mrb[0].mxu0
        %605 = vdwg.mxu0
        %v606 = vrot.slane %v532, 4
        %v607 = vmax.f32 %v532, %v606
        %v608 = vrot.slane %v607, 2
        %v609 = vmax.f32 %v607, %v608
        %v610 = vrot.slane %v609, 1
        %v611 = vmax.f32 %v609, %v610
        %v612 = vrot.slane %v534, 4
        %v613 = vmax.f32 %v534, %v612
        %v614 = vrot.slane %v613, 2
        %v615 = vmax.f32 %v613, %v614
        %v616 = vrot.slane %v615, 1
        %v617 = vmax.f32 %v615, %v616
        %v618 = vrot.slane %v603, 4
        %v619 = vmax.f32 %v603, %v618
        %v620 = vrot.slane %v619, 2
        %v621 = vmax.f32 %v619, %v620
        %v622 = vrot.slane %v621, 1
        %v623 = vmax.f32 %v621, %v622
        %v624 = vsub.f32 %v532, %v611
        %v625 = vsub.f32 %v534, %v617
        %v626 = vsub.f32 %v603, %v623
        %v627 = vmul.f32 %v624, 1.442695
        %v628 = vpow.pop %v627
        %v629 = vmul.f32 %v625, 1.442695
        %v630 = vpow.pop %v629
        %v631 = vmul.f32 %v626, 1.442695
        %v632 = vpow.pop %v631
        %v633 = vrot.slane %v628, 4
        %v634 = vadd.f32 %v628, %v633
        %v635 = vrot.slane %v634, 2
        %v636 = vadd.f32 %v634, %v635
        %v637 = vrot.slane %v636, 1
        %v638 = vadd.f32 %v636, %v637
        %v639 = vrot.slane %v630, 4
        %v640 = vadd.f32 %v630, %v639
        %v641 = vrot.slane %v640, 2
        %v642 = vadd.f32 %v640, %v641
        %v643 = vrot.slane %v642, 1
        %v644 = vadd.f32 %v642, %v643
        %v645 = vrot.slane %v632, 4
        %v646 = vadd.f32 %v632, %v645
        %v647 = vrot.slane %v646, 2
        %v648 = vadd.f32 %v646, %v647
        %v649 = vrot.slane %v648, 1
        %v650 = vadd.f32 %v648, %v649
        %v651 = vrcp.pop %v638
        %v652 = vmul.f32 %v628, %v651
        %v653 = vrcp.pop %v644
        %v654 = vmul.f32 %v630, %v653
        %v655 = vrcp.pop %v650
        %v656 = vmul.f32 %v632, %v655
        %v657 = vpack.c.bf16 %v652, %v652
        %v658 = vpack.c.bf16 %v654, %v654
        %v659 = vpack.c.bf16 %v656, %v656
        %v663 = vunpack.c.l.b16 %v657
        %v664 = vunpack.c.l.b16 %v658
        %v665 = vunpack.c.l.b16 %v659
        %v666 = vpack.c.b16 %v664, %v663
        %v667 = vpack.c.b16 %v665, %v665
        %670 = vst [vmem:[%s242] sm:$0xff] %v666
        %671 = vst [vmem:[%s242 + $0x8] sm:$0xf] %v667
        %s672 = sand.u32 %s140, 1
        %s673 = scalar_lea.sflag [#allocation4], %s672
        %s674 = sand.u32 %s140, 1
        %s675 = smul.addr %s674, 12
        %s676 = scalar_lea.vmem [#allocation5], %s675
        // Predicated region
        $region45: #{tpu_custom_call.1} parent=39 // pred_check
          %p677 = pneg %p150
        $region46: #{tpu_custom_call.1} parent=39 // pred_check_branch
          %679 = sbr.rel (%p677) target = $region48
        $region47: #{tpu_custom_call.1} parent=39 // pred_region
          %s680 = smul.u32 3, %s22
          %s682 = ssub.s32 192, 192
          %683 = vsyncadd %s673, %s682
          %s684 = smul.addr %s680, 64
          %s685 = scalar_lea.hbm %s5, %s684
          %s687 = sshll.u32 %s676, 4
          %s688 = int_to_ptr.vmem [resolvable:$true] %s687
          %690 = dma.vmem_to_hbm [thread:$0]  %s688, 192, %s685, %s673
        $region48: #{tpu_custom_call.1} parent=39 // pred_fallthru
          _
      $region40: #{tpu_custom_call.1} parent=5 // pred_fallthru
        _
      %p691 = scmp.le.s32.totalorder 2, %s17
      // Predicated region
      $region49: #{tpu_custom_call.1} parent=5 // pred_check
        %p692 = pneg %p691
      $region50: #{tpu_custom_call.1} parent=5 // pred_check_branch
        %694 = sbr.rel (%p692) target = $region52
      $region51: #{tpu_custom_call.1} parent=5 // pred_region
        %s695 = ssub.s32 %s17, 2
        // Predicated region
        $region53: #{tpu_custom_call.1} parent=51 // pred_check
          %p696 = pneg %p156
        $region54: #{tpu_custom_call.1} parent=51 // pred_check_branch
          %698 = sbr.rel (%p696) target = $region56
        $region55: #{tpu_custom_call.1} parent=51 // pred_region
          %s699 = sand.u32 %s141, 1
          %s700 = scalar_lea.sflag [#allocation4], %s699
          %s701 = sand.u32 %s141, 1
          %s702 = smul.addr %s701, 12
          %s703 = scalar_lea.vmem [#allocation5], %s702
          %704 = dma.done %s700, 192
        $region56: #{tpu_custom_call.1} parent=51 // pred_fallthru
          _
      $region52: #{tpu_custom_call.1} parent=5 // pred_fallthru
        _
    $region6: #{tpu_custom_call.1} parent=1 // loop_footer
      %s21 = sadd.s32 1, %s17
    $region7: #{tpu_custom_call.1} parent=1 // loop_footer_branch
      %16 = sbr.rel target = $region3
    $region8: #{tpu_custom_call.1} parent=1 // loop_exit
      _
    %705 = vsyncpa [#allocation3], 1
    %s706 = scalar_lea.sflag [#allocation3], 1
    %707 = vsyncpa %s706, 1
    %708 = vsyncpa [#allocation4], 1
    %s709 = scalar_lea.sflag [#allocation4], 1
    %710 = vsyncpa %s709, 1

</llo_original>
